<compile_context>
chip_gen: v7x
topology: tpu7x:2x2x1
jax: 0.10.0
libtpu: 0.0.40
codegen_flags: <defaults>
</compile_context>

<pallas_src>
import math

import jax
import jax.numpy as jnp
from jax import lax
from jax.experimental import pallas as pl
from jax.experimental.pallas import tpu as pltpu


# ---------------------------------------------------------------------------
# Kernels
# ---------------------------------------------------------------------------

def _mean_agg_fused_kernel(a_ref, f_ref, o_ref):
    # a_ref: (b_tile, N, N), f_ref: (b_tile, N, D), o_ref: (b_tile, N, D)
    acc = jnp.einsum(
        "bij,bjd->bid",
        a_ref[...],
        f_ref[...],
        preferred_element_type=jnp.float32,   # f32 accumulation even for bf16 inputs
    )
    o_ref[...] = acc.astype(o_ref.dtype)


def _mean_agg_ktiled_kernel(a_ref, f_ref, o_ref, acc_ref):
    # Large-graph path. grid = (batch, row-tile, k-tile); reduction (k) last.
    # a_ref: (1, tm, tk), f_ref: (1, tk, D), o_ref/acc_ref: (1, tm, D)
    k = pl.program_id(2)

    @pl.when(k == 0)
    def _():
        acc_ref[...] = jnp.zeros_like(acc_ref)

    acc_ref[...] += jnp.einsum(
        "bij,bjd->bid", a_ref[...], f_ref[...],
        preferred_element_type=jnp.float32,
    )

    @pl.when(k == pl.num_programs(2) - 1)
    def _():
        o_ref[...] = acc_ref[...].astype(o_ref.dtype)


# ---------------------------------------------------------------------------
# Tiling helpers (layout- and generation-aware)
# ---------------------------------------------------------------------------

def _round_up(x, m):
    return ((x + m - 1) // m) * m


def _sublane_multiple(dtype):
    # f32 -> 8, bf16 -> 16, int8/fp8 -> 32 (sub-32-bit dtypes pack sublanes).
    return max(1, (8 * 4) // jnp.dtype(dtype).itemsize)


def _padded_bytes(shape2d_or_3d, dtype):
    """Layout-accurate VMEM footprint of one block: last dim rounds up to 128
    lanes, second-to-last to the dtype sublane multiple."""
    dt = jnp.dtype(dtype)
    dims = list(shape2d_or_3d)
    dims[-1] = _round_up(dims[-1], 128)
    if len(dims) >= 2:
        dims[-2] = _round_up(dims[-2], _sublane_multiple(dt))
    return math.prod(dims) * dt.itemsize


def _num_tensorcores():
    try:
        info = pltpu.get_tpu_info()
        for attr in ("num_cores", "core_count", "num_tensorcores",
                     "tensorcores_per_chip"):
            v = getattr(info, attr, None)
            if v:
                return int(v)
    except Exception:
        pass
    return 1   # conservative: v5e/v6e behavior (no >=2-step cap)


def _vmem_budget_bytes():
    # Conservative budget for the double-buffered blocks: well inside the
    # scoped-VMEM default on every generation (16 MiB v5e, 32 MiB v6e/v7x).
    try:
        cap = int(pltpu.get_tpu_info().vmem_capacity_bytes)
    except Exception:
        cap = 128 * 1024 * 1024
    return min(24 * 1024 * 1024, cap // 4)


def _pick_b_tile(B, per_graph_bytes, budget_bytes, num_cores):
    """Largest DIVISOR of B whose double-buffered blocks fit the VMEM budget.
    Using a divisor avoids any batch padding / HBM copies of the inputs."""
    max_bt = max(1, budget_bytes // max(2 * per_graph_bytes, 1))
    if num_cores >= 2 and B >= 2:
        # Keep >= 2 grid steps so both TensorCores (v7x) get work.
        max_bt = min(max_bt, pl.cdiv(B, 2))
    max_bt = min(max_bt, B)
    best = 1
    for d in range(1, B + 1):
        if d <= max_bt and B % d == 0:
            best = d
    return best


def _pick_tile(n, target, multiple):
    """Largest divisor of n that is a multiple of `multiple` and <= target.
    Falls back to full n (a full-extent block is always layout-legal)."""
    best = None
    upper = min(n, target)
    for d in range(multiple, upper + 1, multiple):
        if n % d == 0:
            best = d
    return best if best is not None else n


# ---------------------------------------------------------------------------
# Wrapper
# ---------------------------------------------------------------------------

def mean_aggregator(features, A, *, b_tile=None, out_dtype=None,
                    row_tile=None, k_tile=None, force_ktiled=False):
    """Pallas implementation of MeanAggregator.forward(features, A) = bmm(A, features).

    Inputs are used in their incoming dtype (no wrapper-side cast); accumulation
    is always f32. `out_dtype` lets callers take narrower writeback.
    """
    B, N, D = features.shape
    assert A.shape == (B, N, N), (
        f"A shape {A.shape} incompatible with features {features.shape}")
    if out_dtype is None:
        out_dtype = features.dtype

    num_cores = _num_tensorcores()
    budget = _vmem_budget_bytes()
    per_graph = (_padded_bytes((N, N), A.dtype)
                 + _padded_bytes((N, D), features.dtype)
                 + _padded_bytes((N, D), out_dtype))

    total_bytes = (A.size * A.dtype.itemsize
                   + features.size * features.dtype.itemsize
                   + B * N * D * jnp.dtype(out_dtype).itemsize)

    # ---------------- fused small-graph path (the common GCN case) ----------
    if (2 * per_graph <= budget) and not force_ktiled:
        if b_tile is None:
            b_tile = _pick_b_tile(B, per_graph, budget, num_cores)
        b_tile = int(max(1, min(b_tile, B)))
        while B % b_tile != 0:        # keep batch blocks exact -> no padding
            b_tile -= 1

        step_bytes = b_tile * per_graph
        vmem_limit = int(max(32 * 1024 * 1024, 2 * step_bytes + (8 << 20)))

        cost = pl.CostEstimate(
            flops=2 * B * N * N * D,
            transcendentals=0,
            bytes_accessed=total_bytes,
        )

        return pl.pallas_call(
            _mean_agg_fused_kernel,
            out_shape=jax.ShapeDtypeStruct((B, N, D), out_dtype),
            grid_spec=pltpu.PrefetchScalarGridSpec(
                num_scalar_prefetch=0,
                grid=(B // b_tile,),
                in_specs=[
                    pl.BlockSpec((b_tile, N, N), lambda t: (t, 0, 0)),  # A slab
                    pl.BlockSpec((b_tile, N, D), lambda t: (t, 0, 0)),  # features
                ],
                out_specs=pl.BlockSpec((b_tile, N, D), lambda t: (t, 0, 0)),
            ),
            compiler_params=pltpu.CompilerParams(
                dimension_semantics=("parallel",),
                vmem_limit_bytes=vmem_limit,
            ),
            cost_estimate=cost,
        )(A, features)

    # ---------------- large-graph path: row + contraction tiling ------------
    sub = _sublane_multiple(A.dtype)
    tm = int(row_tile) if row_tile is not None else _pick_tile(N, 256, sub)
    tk = int(k_tile) if k_tile is not None else _pick_tile(N, 512, 128)
    assert N % tm == 0 and (tm % sub == 0 or tm == N), f"bad row_tile {tm}"
    assert N % tk == 0 and (tk % 128 == 0 or tk == N), f"bad k_tile {tk}"

    step_bytes = (_padded_bytes((tm, tk), A.dtype)
                  + _padded_bytes((tk, D), features.dtype)
                  + _padded_bytes((tm, D), out_dtype)
                  + _padded_bytes((tm, D), jnp.float32))    # accumulator scratch
    vmem_limit = int(max(32 * 1024 * 1024, 2 * step_bytes + (8 << 20)))

    cost = pl.CostEstimate(
        flops=2 * B * N * N * D,
        transcendentals=0,
        bytes_accessed=(A.size * A.dtype.itemsize
                        + (N // tm) * features.size * features.dtype.itemsize
                        + B * N * D * jnp.dtype(out_dtype).itemsize),
    )

    return pl.pallas_call(
        _mean_agg_ktiled_kernel,
        out_shape=jax.ShapeDtypeStruct((B, N, D), out_dtype),
        grid_spec=pltpu.PrefetchScalarGridSpec(
            num_scalar_prefetch=0,
            grid=(B, N // tm, N // tk),
            in_specs=[
                pl.BlockSpec((1, tm, tk), lambda b, i, k: (b, i, k)),  # A tile
                pl.BlockSpec((1, tk, D), lambda b, i, k: (b, k, 0)),   # feature tile
            ],
            out_specs=pl.BlockSpec((1, tm, D), lambda b, i, k: (b, i, 0)),
            scratch_shapes=[pltpu.VMEM((1, tm, D), jnp.float32)],
        ),
        compiler_params=pltpu.CompilerParams(
            dimension_semantics=("parallel", "parallel", "arbitrary"),
            vmem_limit_bytes=vmem_limit,
        ),
        cost_estimate=cost,
    )(A, features)


# ---------------------------------------------------------------------------
# Demo / self-test
# ---------------------------------------------------------------------------

if __name__ == "__main__":
    key = jax.random.PRNGKey(0)
    k1, k2, k3, k4, k5, k6 = jax.random.split(key, 6)

    # Config 1 (f32): lane/sublane-aligned GCN-like shapes; fused batch slab.
    B, N, D = 8, 64, 128
    features = jax.random.normal(k1, (B, N, D), dtype=jnp.float32)
    raw_A = jax.random.uniform(k2, (B, N, N), dtype=jnp.float32)
    A = raw_A / jnp.sum(raw_A, axis=-1, keepdims=True)   # row-normalized "mean" adjacency

    out = jax.block_until_ready(mean_aggregator(features, A))
    ref = jnp.einsum("bij,bjd->bid", A, features, precision=lax.Precision.HIGHEST)
    assert out.shape == (B, N, D)
    assert jnp.allclose(out, ref, atol=1e-4, rtol=1e-4), "f32 mismatch vs reference bmm"

    # Config 2: caller already holds bf16 A/features (no wrapper cast), small
    # unaligned shapes, prime B (exercises divisor-based b_tile, no padding),
    # f32 writeback via out_dtype.
    B2, N2, D2 = 3, 16, 32
    f2 = jax.random.normal(k3, (B2, N2, D2), dtype=jnp.float32)
    raw_A2 = jax.random.uniform(k4, (B2, N2, N2), dtype=jnp.float32)
    A2 = raw_A2 / jnp.sum(raw_A2, axis=-1, keepdims=True)
    f2_bf16 = f2.astype(jnp.bfloat16)
    A2_bf16 = A2.astype(jnp.bfloat16)

    out2 = jax.block_until_ready(
        mean_aggregator(f2_bf16, A2_bf16, out_dtype=jnp.float32))
    ref2 = jnp.einsum("bij,bjd->bid",
                      A2_bf16.astype(jnp.float32), f2_bf16.astype(jnp.float32),
                      precision=lax.Precision.HIGHEST)
    assert out2.shape == (B2, N2, D2)
    assert jnp.allclose(out2, ref2, atol=1e-2, rtol=1e-2), "bf16 mismatch vs reference bmm"

    # Config 3: force the large-graph row/K-tiled accumulator path at a small
    # scale to validate it end-to-end (pl.when init/finalize + f32 scratch).
    B3, N3, D3 = 2, 256, 128
    f3 = jax.random.normal(k5, (B3, N3, D3), dtype=jnp.float32)
    raw_A3 = jax.random.uniform(k6, (B3, N3, N3), dtype=jnp.float32)
    A3 = raw_A3 / jnp.sum(raw_A3, axis=-1, keepdims=True)

    out3 = jax.block_until_ready(
        mean_aggregator(f3, A3, force_ktiled=True, row_tile=64, k_tile=128))
    ref3 = jnp.einsum("bij,bjd->bid", A3, f3, precision=lax.Precision.HIGHEST)
    assert out3.shape == (B3, N3, D3)
    assert jnp.allclose(out3, ref3, atol=1e-4, rtol=1e-4), "ktiled mismatch vs reference bmm"

    print("KERNEL_OK")
</pallas_src>

<mosaic_0001>
module attributes {stable_mosaic.version = 11 : i64} {
  func.func @_mean_agg_fused_kernel(%arg0: i32, %arg1: memref<8x64x64xf32, #tpu.memory_space<vmem>>, %arg2: memref<8x64x128xf32, #tpu.memory_space<vmem>>, %arg3: memref<8x64x128xf32, #tpu.memory_space<vmem>>) attributes {dimension_semantics = [#tpu.dimension_semantics<parallel>], iteration_bounds = array<i64: 1>, scalar_prefetch = 0 : i64, scratch_operands = 0 : i64, tpu.core_type = #tpu.core_type<tc>, window_params = [{transform_indices = @transform_0, window_bounds = array<i64: 8, 64, 64>}, {transform_indices = @transform_1, window_bounds = array<i64: 8, 64, 128>}, {transform_indices = @transform_2, window_bounds = array<i64: 8, 64, 128>}]} {
    %c0 = arith.constant 0 : index
    %c0_0 = arith.constant 0 : index
    %c0_1 = arith.constant 0 : index
    %0 = vector.load %arg1[%c0, %c0_0, %c0_1] : memref<8x64x64xf32, #tpu.memory_space<vmem>>, vector<8x64x64xf32>
    %c0_2 = arith.constant 0 : index
    %c0_3 = arith.constant 0 : index
    %c0_4 = arith.constant 0 : index
    %1 = vector.load %arg2[%c0_2, %c0_3, %c0_4] : memref<8x64x128xf32, #tpu.memory_space<vmem>>, vector<8x64x128xf32>
    "tpu.trace_start"() <{level = 10 : i32, message = "bij,bjd->bid"}> : () -> ()
    %cst = arith.constant dense<0.000000e+00> : vector<8x64x128xf32>
    %2 = tpu.matmul %0, %1, %cst {dimension_numbers = #tpu.dot_dimension_numbers<[2], [1], [1], [2], [0, 0, 0, 1, 1, 2], [0], [0]>} : vector<8x64x64xf32>, vector<8x64x128xf32>, vector<8x64x128xf32> -> vector<8x64x128xf32>
    "tpu.trace_stop"() : () -> ()
    %c0_5 = arith.constant 0 : index
    %c0_6 = arith.constant 0 : index
    %c0_7 = arith.constant 0 : index
    %3 = vector.load %arg3[%c0_5, %c0_6, %c0_7] : memref<8x64x128xf32, #tpu.memory_space<vmem>>, vector<8x64x128xf32>
    tpu.vector_store %arg3[%c0_5, %c0_6, %c0_7], %2 {strides = array<i32>} : memref<8x64x128xf32, #tpu.memory_space<vmem>>, vector<8x64x128xf32>,
    return
  }
  func.func @transform_0(%arg0: i32) -> (i32, i32, i32) {
    %c0_i32 = arith.constant 0 : i32
    %c0_i32_0 = arith.constant 0 : i32
    %c0_i32_1 = arith.constant 0 : i32
    return %arg0, %c0_i32, %c0_i32_0 : i32, i32, i32
  }
  func.func @transform_1(%arg0: i32) -> (i32, i32, i32) {
    %c0_i32 = arith.constant 0 : i32
    %c0_i32_0 = arith.constant 0 : i32
    %c0_i32_1 = arith.constant 0 : i32
    return %arg0, %c0_i32, %c0_i32_0 : i32, i32, i32
  }
  func.func @transform_2(%arg0: i32) -> (i32, i32, i32) {
    %c0_i32 = arith.constant 0 : i32
    %c0_i32_0 = arith.constant 0 : i32
    %c0_i32_1 = arith.constant 0 : i32
    return %arg0, %c0_i32, %c0_i32_0 : i32, i32, i32
  }
}

</mosaic_0001>

<llo_original>
// kernel: tpu_custom_call.1
$region0: #{tpu_custom_call.1}
  #allocation0 [shape = 'u32[]', space=smem, size = 0x4, offset = 0x4, fixed_abs, tag = 'smem constant byte address 0x4 - core index']
  #allocation1 [shape = 'u32[144,128]{1,0:T(1,128)}', space=vmem, size = 0x12000, scoped, tag = 'internal scratch']
  %s0 = inlined_call_operand.hbm [shape: f32[8,64,64], index: 0, kind: input, shape index: {}]
  %s1 = inlined_call_operand.hbm [shape: f32[8,64,128], index: 1, kind: input, shape index: {}]
  %s2 = inlined_call_operand.hbm [shape: f32[8,64,128], index: 2, kind: output, shape index: {}]
  %s3 = sld [smem:[#allocation0]]
  $region26: #{tpu_custom_call.1} parent=0
    _
  %s5 = ssub.s32 1, %s3
  %s6 = scalar_select 0, %s5, %s3
  $region1: #{tpu_custom_call.1} parent=0
    #allocation2 [shape = 'u8[262144]{0}', space=vmem, size = 0x40000, scoped, tag = 'input window, operand 0, single buffered']
    #allocation3 [shape = 's32[1]{0}', space=sflag, size = 0x4, scoped, tag = 'scoped memory for tpu_custom_call.1']
    #allocation4 [shape = 's32[1]{0}', space=sflag, size = 0x4, scoped, tag = 'scoped memory for tpu_custom_call.1']
    #allocation5 [shape = 'u8[262144]{0}', space=vmem, size = 0x40000, scoped, tag = 'input window, operand 1, single buffered']
    #allocation6 [shape = 's32[1]{0}', space=sflag, size = 0x4, scoped, tag = 'scoped memory for tpu_custom_call.1']
    #allocation7 [shape = 'u8[262144]{0}', space=vmem, size = 0x40000, scoped, tag = 'output window, operand 0, single buffered']
    %7 = vsyncpa [#allocation3], 0
    %8 = vsyncpa [#allocation6], 0
    %9 = vsyncpa [#allocation4], 0
    // Predicated region
    $region2: #{tpu_custom_call.1} parent=1 // pred_check
      _
    $region3: #{tpu_custom_call.1} parent=1 // pred_check_branch
      %11 = sbr.rel (0) target = $region5
    $region4: #{tpu_custom_call.1} parent=1 // pred_region
      %s13 = ssub.s32 8192, 8192
      %14 = vsyncadd [#allocation3], %s13
      %s15 = sshll.u32 [#allocation2], 4
      %s16 = int_to_ptr.vmem [resolvable:$true] %s15
      %21 = dma.hbm_to_vmem [thread:$0]  %s0, 8192, %s16, [#allocation3], 128, 128, 8
    $region5: #{tpu_custom_call.1} parent=1 // pred_fallthru
      _
    // Predicated region
    $region6: #{tpu_custom_call.1} parent=1 // pred_check
      _
    $region7: #{tpu_custom_call.1} parent=1 // pred_check_branch
      %23 = sbr.rel (0) target = $region9
    $region8: #{tpu_custom_call.1} parent=1 // pred_region
      %s25 = ssub.s32 8192, 8192
      %26 = vsyncadd [#allocation6], %s25
      %s27 = sshll.u32 [#allocation5], 4
      %s28 = int_to_ptr.vmem [resolvable:$true] %s27
      %33 = dma.hbm_to_vmem [thread:$0]  %s1, 8192, %s28, [#allocation6], 128, 128, 8
    $region9: #{tpu_custom_call.1} parent=1 // pred_fallthru
      _
    // Predicated region
    $region10: #{tpu_custom_call.1} parent=1 // pred_check
      _
    $region11: #{tpu_custom_call.1} parent=1 // pred_check_branch
      %35 = sbr.rel (0) target = $region13
    $region12: #{tpu_custom_call.1} parent=1 // pred_region
      %36 = dma.done [#allocation3], 8192
    $region13: #{tpu_custom_call.1} parent=1 // pred_fallthru
      _
    // Predicated region
    $region14: #{tpu_custom_call.1} parent=1 // pred_check
      _
    $region15: #{tpu_custom_call.1} parent=1 // pred_check_branch
      %38 = sbr.rel (0) target = $region17
    $region16: #{tpu_custom_call.1} parent=1 // pred_region
      %39 = dma.done [#allocation6], 8192
    $region17: #{tpu_custom_call.1} parent=1 // pred_fallthru
      _
    %v40 = vld [vmem:[#allocation2] sm:$0xff]
    %v41 = vld [vmem:[#allocation2 + $0x8] sm:$0xff]
    %v42 = vld [vmem:[#allocation2 + $0x10] sm:$0xff]
    %v43 = vld [vmem:[#allocation2 + $0x18] sm:$0xff]
    %v44 = vld [vmem:[#allocation2 + $0x20] sm:$0xff]
    %v45 = vld [vmem:[#allocation2 + $0x28] sm:$0xff]
    %v46 = vld [vmem:[#allocation2 + $0x30] sm:$0xff]
    %v47 = vld [vmem:[#allocation2 + $0x38] sm:$0xff]
    %v48 = vld [vmem:[#allocation2 + $0x40] sm:$0xff]
    %v49 = vld [vmem:[#allocation2 + $0x48] sm:$0xff]
    %v50 = vld [vmem:[#allocation2 + $0x50] sm:$0xff]
    %v51 = vld [vmem:[#allocation2 + $0x58] sm:$0xff]
    %v52 = vld [vmem:[#allocation2 + $0x60] sm:$0xff]
    %v53 = vld [vmem:[#allocation2 + $0x68] sm:$0xff]
    %v54 = vld [vmem:[#allocation2 + $0x70] sm:$0xff]
    %v55 = vld [vmem:[#allocation2 + $0x78] sm:$0xff]
    %v56 = vld [vmem:[#allocation2 + $0x80] sm:$0xff]
    %v57 = vld [vmem:[#allocation2 + $0x88] sm:$0xff]
    %v58 = vld [vmem:[#allocation2 + $0x90] sm:$0xff]
    %v59 = vld [vmem:[#allocation2 + $0x98] sm:$0xff]
    %v60 = vld [vmem:[#allocation2 + $0xa0] sm:$0xff]
    %v61 = vld [vmem:[#allocation2 + $0xa8] sm:$0xff]
    %v62 = vld [vmem:[#allocation2 + $0xb0] sm:$0xff]
    %v63 = vld [vmem:[#allocation2 + $0xb8] sm:$0xff]
    %v64 = vld [vmem:[#allocation2 + $0xc0] sm:$0xff]
    %v65 = vld [vmem:[#allocation2 + $0xc8] sm:$0xff]
    %v66 = vld [vmem:[#allocation2 + $0xd0] sm:$0xff]
    %v67 = vld [vmem:[#allocation2 + $0xd8] sm:$0xff]
    %v68 = vld [vmem:[#allocation2 + $0xe0] sm:$0xff]
    %v69 = vld [vmem:[#allocation2 + $0xe8] sm:$0xff]
    %v70 = vld [vmem:[#allocation2 + $0xf0] sm:$0xff]
    %v71 = vld [vmem:[#allocation2 + $0xf8] sm:$0xff]
    %v72 = vld [vmem:[#allocation2 + $0x100] sm:$0xff]
    %v73 = vld [vmem:[#allocation2 + $0x108] sm:$0xff]
    %v74 = vld [vmem:[#allocation2 + $0x110] sm:$0xff]
    %v75 = vld [vmem:[#allocation2 + $0x118] sm:$0xff]
    %v76 = vld [vmem:[#allocation2 + $0x120] sm:$0xff]
    %v77 = vld [vmem:[#allocation2 + $0x128] sm:$0xff]
    %v78 = vld [vmem:[#allocation2 + $0x130] sm:$0xff]
    %v79 = vld [vmem:[#allocation2 + $0x138] sm:$0xff]
    %v80 = vld [vmem:[#allocation2 + $0x140] sm:$0xff]
    %v81 = vld [vmem:[#allocation2 + $0x148] sm:$0xff]
    %v82 = vld [vmem:[#allocation2 + $0x150] sm:$0xff]
    %v83 = vld [vmem:[#allocation2 + $0x158] sm:$0xff]
    %v84 = vld [vmem:[#allocation2 + $0x160] sm:$0xff]
    %v85 = vld [vmem:[#allocation2 + $0x168] sm:$0xff]
    %v86 = vld [vmem:[#allocation2 + $0x170] sm:$0xff]
    %v87 = vld [vmem:[#allocation2 + $0x178] sm:$0xff]
    %v88 = vld [vmem:[#allocation2 + $0x180] sm:$0xff]
    %v89 = vld [vmem:[#allocation2 + $0x188] sm:$0xff]
    %v90 = vld [vmem:[#allocation2 + $0x190] sm:$0xff]
    %v91 = vld [vmem:[#allocation2 + $0x198] sm:$0xff]
    %v92 = vld [vmem:[#allocation2 + $0x1a0] sm:$0xff]
    %v93 = vld [vmem:[#allocation2 + $0x1a8] sm:$0xff]
    %v94 = vld [vmem:[#allocation2 + $0x1b0] sm:$0xff]
    %v95 = vld [vmem:[#allocation2 + $0x1b8] sm:$0xff]
    %v96 = vld [vmem:[#allocation2 + $0x1c0] sm:$0xff]
    %v97 = vld [vmem:[#allocation2 + $0x1c8] sm:$0xff]
    %v98 = vld [vmem:[#allocation2 + $0x1d0] sm:$0xff]
    %v99 = vld [vmem:[#allocation2 + $0x1d8] sm:$0xff]
    %v100 = vld [vmem:[#allocation2 + $0x1e0] sm:$0xff]
    %v101 = vld [vmem:[#allocation2 + $0x1e8] sm:$0xff]
    %v102 = vld [vmem:[#allocation2 + $0x1f0] sm:$0xff]
    %v103 = vld [vmem:[#allocation2 + $0x1f8] sm:$0xff]
    %v104 = vld [vmem:[#allocation5] sm:$0xff]
    %v105 = vld [vmem:[#allocation5 + $0x8] sm:$0xff]
    %v106 = vld [vmem:[#allocation5 + $0x10] sm:$0xff]
    %v107 = vld [vmem:[#allocation5 + $0x18] sm:$0xff]
    %v108 = vld [vmem:[#allocation5 + $0x20] sm:$0xff]
    %v109 = vld [vmem:[#allocation5 + $0x28] sm:$0xff]
    %v110 = vld [vmem:[#allocation5 + $0x30] sm:$0xff]
    %v111 = vld [vmem:[#allocation5 + $0x38] sm:$0xff]
    %v112 = vld [vmem:[#allocation5 + $0x40] sm:$0xff]
    %v113 = vld [vmem:[#allocation5 + $0x48] sm:$0xff]
    %v114 = vld [vmem:[#allocation5 + $0x50] sm:$0xff]
    %v115 = vld [vmem:[#allocation5 + $0x58] sm:$0xff]
    %v116 = vld [vmem:[#allocation5 + $0x60] sm:$0xff]
    %v117 = vld [vmem:[#allocation5 + $0x68] sm:$0xff]
    %v118 = vld [vmem:[#allocation5 + $0x70] sm:$0xff]
    %v119 = vld [vmem:[#allocation5 + $0x78] sm:$0xff]
    %v120 = vld [vmem:[#allocation5 + $0x80] sm:$0xff]
    %v121 = vld [vmem:[#allocation5 + $0x88] sm:$0xff]
    %v122 = vld [vmem:[#allocation5 + $0x90] sm:$0xff]
    %v123 = vld [vmem:[#allocation5 + $0x98] sm:$0xff]
    %v124 = vld [vmem:[#allocation5 + $0xa0] sm:$0xff]
    %v125 = vld [vmem:[#allocation5 + $0xa8] sm:$0xff]
    %v126 = vld [vmem:[#allocation5 + $0xb0] sm:$0xff]
    %v127 = vld [vmem:[#allocation5 + $0xb8] sm:$0xff]
    %v128 = vld [vmem:[#allocation5 + $0xc0] sm:$0xff]
    %v129 = vld [vmem:[#allocation5 + $0xc8] sm:$0xff]
    %v130 = vld [vmem:[#allocation5 + $0xd0] sm:$0xff]
    %v131 = vld [vmem:[#allocation5 + $0xd8] sm:$0xff]
    %v132 = vld [vmem:[#allocation5 + $0xe0] sm:$0xff]
    %v133 = vld [vmem:[#allocation5 + $0xe8] sm:$0xff]
    %v134 = vld [vmem:[#allocation5 + $0xf0] sm:$0xff]
    %v135 = vld [vmem:[#allocation5 + $0xf8] sm:$0xff]
    %v136 = vld [vmem:[#allocation5 + $0x100] sm:$0xff]
    %v137 = vld [vmem:[#allocation5 + $0x108] sm:$0xff]
    %v138 = vld [vmem:[#allocation5 + $0x110] sm:$0xff]
    %v139 = vld [vmem:[#allocation5 + $0x118] sm:$0xff]
    %v140 = vld [vmem:[#allocation5 + $0x120] sm:$0xff]
    %v141 = vld [vmem:[#allocation5 + $0x128] sm:$0xff]
    %v142 = vld [vmem:[#allocation5 + $0x130] sm:$0xff]
    %v143 = vld [vmem:[#allocation5 + $0x138] sm:$0xff]
    %v144 = vld [vmem:[#allocation5 + $0x140] sm:$0xff]
    %v145 = vld [vmem:[#allocation5 + $0x148] sm:$0xff]
    %v146 = vld [vmem:[#allocation5 + $0x150] sm:$0xff]
    %v147 = vld [vmem:[#allocation5 + $0x158] sm:$0xff]
    %v148 = vld [vmem:[#allocation5 + $0x160] sm:$0xff]
    %v149 = vld [vmem:[#allocation5 + $0x168] sm:$0xff]
    %v150 = vld [vmem:[#allocation5 + $0x170] sm:$0xff]
    %v151 = vld [vmem:[#allocation5 + $0x178] sm:$0xff]
    %v152 = vld [vmem:[#allocation5 + $0x180] sm:$0xff]
    %v153 = vld [vmem:[#allocation5 + $0x188] sm:$0xff]
    %v154 = vld [vmem:[#allocation5 + $0x190] sm:$0xff]
    %v155 = vld [vmem:[#allocation5 + $0x198] sm:$0xff]
    %v156 = vld [vmem:[#allocation5 + $0x1a0] sm:$0xff]
    %v157 = vld [vmem:[#allocation5 + $0x1a8] sm:$0xff]
    %v158 = vld [vmem:[#allocation5 + $0x1b0] sm:$0xff]
    %v159 = vld [vmem:[#allocation5 + $0x1b8] sm:$0xff]
    %v160 = vld [vmem:[#allocation5 + $0x1c0] sm:$0xff]
    %v161 = vld [vmem:[#allocation5 + $0x1c8] sm:$0xff]
    %v162 = vld [vmem:[#allocation5 + $0x1d0] sm:$0xff]
    %v163 = vld [vmem:[#allocation5 + $0x1d8] sm:$0xff]
    %v164 = vld [vmem:[#allocation5 + $0x1e0] sm:$0xff]
    %v165 = vld [vmem:[#allocation5 + $0x1e8] sm:$0xff]
    %v166 = vld [vmem:[#allocation5 + $0x1f0] sm:$0xff]
    %v167 = vld [vmem:[#allocation5 + $0x1f8] sm:$0xff]
    %vm168 = vcmask 523264
    %v170 = vsel %vm168, %v40, 0
    %v173 = vsel %vm168, %v41, 0
    %v176 = vsel %vm168, %v42, 0
    %v179 = vsel %vm168, %v43, 0
    %v182 = vsel %vm168, %v44, 0
    %v185 = vsel %vm168, %v45, 0
    %v188 = vsel %vm168, %v46, 0
    %v191 = vsel %vm168, %v47, 0
    %193 = vmatprep.subr.mxu0 0.0
    %194 = vmatpush1.msra.mxu0 %v104
    %195 = vmatprep.subr.mxu0 0.0
    %196 = vmatpush1.msra.mxu0 %v105
    %197 = vmatprep.subr.mxu0 0.0
    %198 = vmatpush1.msra.mxu0 %v106
    %199 = vmatprep.subr.mxu0 0.0
    %200 = vmatpush1.msra.mxu0 %v107
    %201 = vmatprep.subr.mxu0 0.0
    %202 = vmatpush1.msra.mxu0 %v108
    %203 = vmatprep.subr.mxu0 0.0
    %204 = vmatpush1.msra.mxu0 %v109
    %205 = vmatprep.subr.mxu0 0.0
    %206 = vmatpush1.msra.mxu0 %v110
    %207 = vmatprep.subr.mxu0 0.0
    %208 = vmatpush1.msra.mxu0 %v111
    %209 = vmatprep.subr.mxu0 0.0
    %210 = vmatpush1.msra.mxu0 0.0
    %211 = vmatprep.subr.mxu0 0.0
    %212 = vmatpush1.msra.mxu0 0.0
    %213 = vmatprep.subr.mxu0 0.0
    %214 = vmatpush1.msra.mxu0 0.0
    %215 = vmatprep.subr.mxu0 0.0
    %216 = vmatpush1.msra.mxu0 0.0
    %217 = vmatprep.subr.mxu0 0.0
    %218 = vmatpush1.msra.mxu0 0.0
    %219 = vmatprep.subr.mxu0 0.0
    %220 = vmatpush1.msra.mxu0 0.0
    %221 = vmatprep.subr.mxu0 0.0
    %222 = vmatpush1.msra.mxu0 0.0
    %223 = vmatprep.subr.mxu0 0.0
    %224 = vmatpush1.msra.mxu0 0.0
    %225 = vmatprep.subr.mxu0 0.0
    %226 = vmatpush1.msra.mxu0 0.0
    %227 = vmatprep.subr.mxu0 0.0
    %228 = vmatpush1.msra.mxu0 0.0
    %229 = vmatprep.subr.mxu0 0.0
    %230 = vmatpush1.msra.mxu0 0.0
    %231 = vmatprep.subr.mxu0 0.0
    %232 = vmatpush1.msra.mxu0 0.0
    %233 = vmatprep.subr.mxu0 0.0
    %234 = vmatpush1.msra.mxu0 0.0
    %235 = vmatprep.subr.mxu0 0.0
    %236 = vmatpush1.msra.mxu0 0.0
    %237 = vmatprep.subr.mxu0 0.0
    %238 = vmatpush1.msra.mxu0 0.0
    %239 = vmatprep.subr.mxu0 0.0
    %240 = vmatpush1.msra.mxu0 0.0
    %241 = vmatprep.subr.mxu0 0.0
    %242 = vmatpush1.msra.mxu0 0.0
    %243 = vmatprep.subr.mxu0 0.0
    %244 = vmatpush1.msra.mxu0 0.0
    %245 = vmatprep.subr.mxu0 0.0
    %246 = vmatpush1.msra.mxu0 0.0
    %247 = vmatprep.subr.mxu0 0.0
    %248 = vmatpush1.msra.mxu0 0.0
    %249 = vmatprep.subr.mxu0 0.0
    %250 = vmatpush1.msra.mxu0 0.0
    %251 = vmatprep.subr.mxu0 0.0
    %252 = vmatpush1.msra.mxu0 0.0
    %253 = vmatprep.subr.mxu0 0.0
    %254 = vmatpush1.msra.mxu0 0.0
    %255 = vmatprep.subr.mxu0 0.0
    %256 = vmatpush1.msra.mxu0 0.0
    %257 = vmatprep.mubr.f32.mxu0 0.0
    %258 = vmatmul.mubr.f32.gmra.mrb[0].mxu0 %v170
    %v259 = vpop.f32.mrb[0].mxu0
    %v260 = vadd.f32 0.0, %v259
    %v261 = vpop.f32.mrb[0].mxu0
    %262 = vmatprep.mubr.f32.mxu0 0.0
    %263 = vmatmul.mubr.f32.gmra.mrb[0].mxu0 %v173
    %v264 = vpop.f32.mrb[0].mxu0
    %v265 = vadd.f32 0.0, %v264
    %v266 = vpop.f32.mrb[0].mxu0
    %267 = vmatprep.mubr.f32.mxu0 0.0
    %268 = vmatmul.mubr.f32.gmra.mrb[0].mxu0 %v176
    %v269 = vpop.f32.mrb[0].mxu0
    %v270 = vadd.f32 0.0, %v269
    %v271 = vpop.f32.mrb[0].mxu0
    %272 = vmatprep.mubr.f32.mxu0 0.0
    %273 = vmatmul.mubr.f32.gmra.mrb[0].mxu0 %v179
    %v274 = vpop.f32.mrb[0].mxu0
    %v275 = vadd.f32 0.0, %v274
    %v276 = vpop.f32.mrb[0].mxu0
    %277 = vmatprep.mubr.f32.mxu0 0.0
    %278 = vmatmul.mubr.f32.gmra.mrb[0].mxu0 %v182
    %v279 = vpop.f32.mrb[0].mxu0
    %v280 = vadd.f32 0.0, %v279
    %v281 = vpop.f32.mrb[0].mxu0
    %282 = vmatprep.mubr.f32.mxu0 0.0
    %283 = vmatmul.mubr.f32.gmra.mrb[0].mxu0 %v185
    %v284 = vpop.f32.mrb[0].mxu0
    %v285 = vadd.f32 0.0, %v284
    %v286 = vpop.f32.mrb[0].mxu0
    %287 = vmatprep.mubr.f32.mxu0 0.0
    %288 = vmatmul.mubr.f32.gmra.mrb[0].mxu0 %v188
    %v289 = vpop.f32.mrb[0].mxu0
    %v290 = vadd.f32 0.0, %v289
    %v291 = vpop.f32.mrb[0].mxu0
    %292 = vmatprep.mubr.f32.mxu0 0.0
    %293 = vmatmul.mubr.f32.gmra.mrb[0].mxu0 %v191
    %v294 = vpop.f32.mrb[0].mxu0
    %v295 = vadd.f32 0.0, %v294
    %v296 = vpop.f32.mrb[0].mxu0
    %297 = vdwg.mxu0
    %v299 = vsel %vm168, %v48, 0
    %v302 = vsel %vm168, %v49, 0
    %v305 = vsel %vm168, %v50, 0
    %v308 = vsel %vm168, %v51, 0
    %v311 = vsel %vm168, %v52, 0
    %v314 = vsel %vm168, %v53, 0
    %v317 = vsel %vm168, %v54, 0
    %v320 = vsel %vm168, %v55, 0
    %322 = vmatprep.subr.mxu0 0.0
    %323 = vmatpush1.msra.mxu0 %v112
    %324 = vmatprep.subr.mxu0 0.0
    %325 = vmatpush1.msra.mxu0 %v113
    %326 = vmatprep.subr.mxu0 0.0
    %327 = vmatpush1.msra.mxu0 %v114
    %328 = vmatprep.subr.mxu0 0.0
    %329 = vmatpush1.msra.mxu0 %v115
    %330 = vmatprep.subr.mxu0 0.0
    %331 = vmatpush1.msra.mxu0 %v116
    %332 = vmatprep.subr.mxu0 0.0
    %333 = vmatpush1.msra.mxu0 %v117
    %334 = vmatprep.subr.mxu0 0.0
    %335 = vmatpush1.msra.mxu0 %v118
    %336 = vmatprep.subr.mxu0 0.0
    %337 = vmatpush1.msra.mxu0 %v119
    %338 = vmatprep.subr.mxu0 0.0
    %339 = vmatpush1.msra.mxu0 0.0
    %340 = vmatprep.subr.mxu0 0.0
    %341 = vmatpush1.msra.mxu0 0.0
    %342 = vmatprep.subr.mxu0 0.0
    %343 = vmatpush1.msra.mxu0 0.0
    %344 = vmatprep.subr.mxu0 0.0
    %345 = vmatpush1.msra.mxu0 0.0
    %346 = vmatprep.subr.mxu0 0.0
    %347 = vmatpush1.msra.mxu0 0.0
    %348 = vmatprep.subr.mxu0 0.0
    %349 = vmatpush1.msra.mxu0 0.0
    %350 = vmatprep.subr.mxu0 0.0
    %351 = vmatpush1.msra.mxu0 0.0
    %352 = vmatprep.subr.mxu0 0.0
    %353 = vmatpush1.msra.mxu0 0.0
    %354 = vmatprep.subr.mxu0 0.0
    %355 = vmatpush1.msra.mxu0 0.0
    %356 = vmatprep.subr.mxu0 0.0
    %357 = vmatpush1.msra.mxu0 0.0
    %358 = vmatprep.subr.mxu0 0.0
    %359 = vmatpush1.msra.mxu0 0.0
    %360 = vmatprep.subr.mxu0 0.0
    %361 = vmatpush1.msra.mxu0 0.0
    %362 = vmatprep.subr.mxu0 0.0
    %363 = vmatpush1.msra.mxu0 0.0
    %364 = vmatprep.subr.mxu0 0.0
    %365 = vmatpush1.msra.mxu0 0.0
    %366 = vmatprep.subr.mxu0 0.0
    %367 = vmatpush1.msra.mxu0 0.0
    %368 = vmatprep.subr.mxu0 0.0
    %369 = vmatpush1.msra.mxu0 0.0
    %370 = vmatprep.subr.mxu0 0.0
    %371 = vmatpush1.msra.mxu0 0.0
    %372 = vmatprep.subr.mxu0 0.0
    %373 = vmatpush1.msra.mxu0 0.0
    %374 = vmatprep.subr.mxu0 0.0
    %375 = vmatpush1.msra.mxu0 0.0
    %376 = vmatprep.subr.mxu0 0.0
    %377 = vmatpush1.msra.mxu0 0.0
    %378 = vmatprep.subr.mxu0 0.0
    %379 = vmatpush1.msra.mxu0 0.0
    %380 = vmatprep.subr.mxu0 0.0
    %381 = vmatpush1.msra.mxu0 0.0
    %382 = vmatprep.subr.mxu0 0.0
    %383 = vmatpush1.msra.mxu0 0.0
    %384 = vmatprep.subr.mxu0 0.0
    %385 = vmatpush1.msra.mxu0 0.0
    %386 = vmatprep.mubr.f32.mxu0 0.0
    %387 = vmatmul.mubr.f32.gmra.mrb[0].mxu0 %v299
    %v388 = vpop.f32.mrb[0].mxu0
    %v389 = vadd.f32 0.0, %v388
    %v390 = vpop.f32.mrb[0].mxu0
    %391 = vmatprep.mubr.f32.mxu0 0.0
    %392 = vmatmul.mubr.f32.gmra.mrb[0].mxu0 %v302
    %v393 = vpop.f32.mrb[0].mxu0
    %v394 = vadd.f32 0.0, %v393
    %v395 = vpop.f32.mrb[0].mxu0
    %396 = vmatprep.mubr.f32.mxu0 0.0
    %397 = vmatmul.mubr.f32.gmra.mrb[0].mxu0 %v305
    %v398 = vpop.f32.mrb[0].mxu0
    %v399 = vadd.f32 0.0, %v398
    %v400 = vpop.f32.mrb[0].mxu0
    %401 = vmatprep.mubr.f32.mxu0 0.0
    %402 = vmatmul.mubr.f32.gmra.mrb[0].mxu0 %v308
    %v403 = vpop.f32.mrb[0].mxu0
    %v404 = vadd.f32 0.0, %v403
    %v405 = vpop.f32.mrb[0].mxu0
    %406 = vmatprep.mubr.f32.mxu0 0.0
    %407 = vmatmul.mubr.f32.gmra.mrb[0].mxu0 %v311
    %v408 = vpop.f32.mrb[0].mxu0
    %v409 = vadd.f32 0.0, %v408
    %v410 = vpop.f32.mrb[0].mxu0
    %411 = vmatprep.mubr.f32.mxu0 0.0
    %412 = vmatmul.mubr.f32.gmra.mrb[0].mxu0 %v314
    %v413 = vpop.f32.mrb[0].mxu0
    %v414 = vadd.f32 0.0, %v413
    %v415 = vpop.f32.mrb[0].mxu0
    %416 = vmatprep.mubr.f32.mxu0 0.0
    %417 = vmatmul.mubr.f32.gmra.mrb[0].mxu0 %v317
    %v418 = vpop.f32.mrb[0].mxu0
    %v419 = vadd.f32 0.0, %v418
    %v420 = vpop.f32.mrb[0].mxu0
    %421 = vmatprep.mubr.f32.mxu0 0.0
    %422 = vmatmul.mubr.f32.gmra.mrb[0].mxu0 %v320
    %v423 = vpop.f32.mrb[0].mxu0
    %v424 = vadd.f32 0.0, %v423
    %v425 = vpop.f32.mrb[0].mxu0
    %426 = vdwg.mxu0
    %v428 = vsel %vm168, %v56, 0
    %v431 = vsel %vm168, %v57, 0
    %v434 = vsel %vm168, %v58, 0
    %v437 = vsel %vm168, %v59, 0
    %v440 = vsel %vm168, %v60, 0
    %v443 = vsel %vm168, %v61, 0
    %v446 = vsel %vm168, %v62, 0
    %v449 = vsel %vm168, %v63, 0
    %451 = vmatprep.subr.mxu0 0.0
    %452 = vmatpush1.msra.mxu0 %v120
    %453 = vmatprep.subr.mxu0 0.0
    %454 = vmatpush1.msra.mxu0 %v121
    %455 = vmatprep.subr.mxu0 0.0
    %456 = vmatpush1.msra.mxu0 %v122
    %457 = vmatprep.subr.mxu0 0.0
    %458 = vmatpush1.msra.mxu0 %v123
    %459 = vmatprep.subr.mxu0 0.0
    %460 = vmatpush1.msra.mxu0 %v124
    %461 = vmatprep.subr.mxu0 0.0
    %462 = vmatpush1.msra.mxu0 %v125
    %463 = vmatprep.subr.mxu0 0.0
    %464 = vmatpush1.msra.mxu0 %v126
    %465 = vmatprep.subr.mxu0 0.0
    %466 = vmatpush1.msra.mxu0 %v127
    %467 = vmatprep.subr.mxu0 0.0
    %468 = vmatpush1.msra.mxu0 0.0
    %469 = vmatprep.subr.mxu0 0.0
    %470 = vmatpush1.msra.mxu0 0.0
    %471 = vmatprep.subr.mxu0 0.0
    %472 = vmatpush1.msra.mxu0 0.0
    %473 = vmatprep.subr.mxu0 0.0
    %474 = vmatpush1.msra.mxu0 0.0
    %475 = vmatprep.subr.mxu0 0.0
    %476 = vmatpush1.msra.mxu0 0.0
    %477 = vmatprep.subr.mxu0 0.0
    %478 = vmatpush1.msra.mxu0 0.0
    %479 = vmatprep.subr.mxu0 0.0
    %480 = vmatpush1.msra.mxu0 0.0
    %481 = vmatprep.subr.mxu0 0.0
    %482 = vmatpush1.msra.mxu0 0.0
    %483 = vmatprep.subr.mxu0 0.0
    %484 = vmatpush1.msra.mxu0 0.0
    %485 = vmatprep.subr.mxu0 0.0
    %486 = vmatpush1.msra.mxu0 0.0
    %487 = vmatprep.subr.mxu0 0.0
    %488 = vmatpush1.msra.mxu0 0.0
    %489 = vmatprep.subr.mxu0 0.0
    %490 = vmatpush1.msra.mxu0 0.0
    %491 = vmatprep.subr.mxu0 0.0
    %492 = vmatpush1.msra.mxu0 0.0
    %493 = vmatprep.subr.mxu0 0.0
    %494 = vmatpush1.msra.mxu0 0.0
    %495 = vmatprep.subr.mxu0 0.0
    %496 = vmatpush1.msra.mxu0 0.0
    %497 = vmatprep.subr.mxu0 0.0
    %498 = vmatpush1.msra.mxu0 0.0
    %499 = vmatprep.subr.mxu0 0.0
    %500 = vmatpush1.msra.mxu0 0.0
    %501 = vmatprep.subr.mxu0 0.0
    %502 = vmatpush1.msra.mxu0 0.0
    %503 = vmatprep.subr.mxu0 0.0
    %504 = vmatpush1.msra.mxu0 0.0
    %505 = vmatprep.subr.mxu0 0.0
    %506 = vmatpush1.msra.mxu0 0.0
    %507 = vmatprep.subr.mxu0 0.0
    %508 = vmatpush1.msra.mxu0 0.0
    %509 = vmatprep.subr.mxu0 0.0
    %510 = vmatpush1.msra.mxu0 0.0
    %511 = vmatprep.subr.mxu0 0.0
    %512 = vmatpush1.msra.mxu0 0.0
    %513 = vmatprep.subr.mxu0 0.0
    %514 = vmatpush1.msra.mxu0 0.0
    %515 = vmatprep.mubr.f32.mxu0 0.0
    %516 = vmatmul.mubr.f32.gmra.mrb[0].mxu0 %v428
    %v517 = vpop.f32.mrb[0].mxu0
    %v518 = vadd.f32 0.0, %v517
    %v519 = vpop.f32.mrb[0].mxu0
    %520 = vmatprep.mubr.f32.mxu0 0.0
    %521 = vmatmul.mubr.f32.gmra.mrb[0].mxu0 %v431
    %v522 = vpop.f32.mrb[0].mxu0
    %v523 = vadd.f32 0.0, %v522
    %v524 = vpop.f32.mrb[0].mxu0
    %525 = vmatprep.mubr.f32.mxu0 0.0
    %526 = vmatmul.mubr.f32.gmra.mrb[0].mxu0 %v434
    %v527 = vpop.f32.mrb[0].mxu0
    %v528 = vadd.f32 0.0, %v527
    %v529 = vpop.f32.mrb[0].mxu0
    %530 = vmatprep.mubr.f32.mxu0 0.0
    %531 = vmatmul.mubr.f32.gmra.mrb[0].mxu0 %v437
    %v532 = vpop.f32.mrb[0].mxu0
    %v533 = vadd.f32 0.0, %v532
    %v534 = vpop.f32.mrb[0].mxu0
    %535 = vmatprep.mubr.f32.mxu0 0.0
    %536 = vmatmul.mubr.f32.gmra.mrb[0].mxu0 %v440
    %v537 = vpop.f32.mrb[0].mxu0
    %v538 = vadd.f32 0.0, %v537
    %v539 = vpop.f32.mrb[0].mxu0
    %540 = vmatprep.mubr.f32.mxu0 0.0
    %541 = vmatmul.mubr.f32.gmra.mrb[0].mxu0 %v443
    %v542 = vpop.f32.mrb[0].mxu0
    %v543 = vadd.f32 0.0, %v542
    %v544 = vpop.f32.mrb[0].mxu0
    %545 = vmatprep.mubr.f32.mxu0 0.0
    %546 = vmatmul.mubr.f32.gmra.mrb[0].mxu0 %v446
    %v547 = vpop.f32.mrb[0].mxu0
    %v548 = vadd.f32 0.0, %v547
    %v549 = vpop.f32.mrb[0].mxu0
    %550 = vmatprep.mubr.f32.mxu0 0.0
    %551 = vmatmul.mubr.f32.gmra.mrb[0].mxu0 %v449
    %v552 = vpop.f32.mrb[0].mxu0
    %v553 = vadd.f32 0.0, %v552
    %v554 = vpop.f32.mrb[0].mxu0
    %555 = vdwg.mxu0
    %v557 = vsel %vm168, %v64, 0
    %v560 = vsel %vm168, %v65, 0
    %v563 = vsel %vm168, %v66, 0
    %v566 = vsel %vm168, %v67, 0
    %v569 = vsel %vm168, %v68, 0
    %v572 = vsel %vm168, %v69, 0
    %v575 = vsel %vm168, %v70, 0
    %v578 = vsel %vm168, %v71, 0
    %580 = vmatprep.subr.mxu0 0.0
    %581 = vmatpush1.msra.mxu0 %v128
    %582 = vmatprep.subr.mxu0 0.0
    %583 = vmatpush1.msra.mxu0 %v129
    %584 = vmatprep.subr.mxu0 0.0
    %585 = vmatpush1.msra.mxu0 %v130
    %586 = vmatprep.subr.mxu0 0.0
    %587 = vmatpush1.msra.mxu0 %v131
    %588 = vmatprep.subr.mxu0 0.0
    %589 = vmatpush1.msra.mxu0 %v132
    %590 = vmatprep.subr.mxu0 0.0
    %591 = vmatpush1.msra.mxu0 %v133
    %592 = vmatprep.subr.mxu0 0.0
    %593 = vmatpush1.msra.mxu0 %v134
    %594 = vmatprep.subr.mxu0 0.0
    %595 = vmatpush1.msra.mxu0 %v135
    %596 = vmatprep.subr.mxu0 0.0
    %597 = vmatpush1.msra.mxu0 0.0
    %598 = vmatprep.subr.mxu0 0.0
    %599 = vmatpush1.msra.mxu0 0.0
    %600 = vmatprep.subr.mxu0 0.0
    %601 = vmatpush1.msra.mxu0 0.0
    %602 = vmatprep.subr.mxu0 0.0
    %603 = vmatpush1.msra.mxu0 0.0
    %604 = vmatprep.subr.mxu0 0.0
    %605 = vmatpush1.msra.mxu0 0.0
    %606 = vmatprep.subr.mxu0 0.0
    %607 = vmatpush1.msra.mxu0 0.0
    %608 = vmatprep.subr.mxu0 0.0
    %609 = vmatpush1.msra.mxu0 0.0
    %610 = vmatprep.subr.mxu0 0.0
    %611 = vmatpush1.msra.mxu0 0.0
    %612 = vmatprep.subr.mxu0 0.0
    %613 = vmatpush1.msra.mxu0 0.0
    %614 = vmatprep.subr.mxu0 0.0
    %615 = vmatpush1.msra.mxu0 0.0
    %616 = vmatprep.subr.mxu0 0.0
    %617 = vmatpush1.msra.mxu0 0.0
    %618 = vmatprep.subr.mxu0 0.0
    %619 = vmatpush1.msra.mxu0 0.0
    %620 = vmatprep.subr.mxu0 0.0
    %621 = vmatpush1.msra.mxu0 0.0
    %622 = vmatprep.subr.mxu0 0.0
    %623 = vmatpush1.msra.mxu0 0.0
    %624 = vmatprep.subr.mxu0 0.0
    %625 = vmatpush1.msra.mxu0 0.0
    %626 = vmatprep.subr.mxu0 0.0
    %627 = vmatpush1.msra.mxu0 0.0
    %628 = vmatprep.subr.mxu0 0.0
    %629 = vmatpush1.msra.mxu0 0.0
    %630 = vmatprep.subr.mxu0 0.0
    %631 = vmatpush1.msra.mxu0 0.0
    %632 = vmatprep.subr.mxu0 0.0
    %633 = vmatpush1.msra.mxu0 0.0
    %634 = vmatprep.subr.mxu0 0.0
    %635 = vmatpush1.msra.mxu0 0.0
    %636 = vmatprep.subr.mxu0 0.0
    %637 = vmatpush1.msra.mxu0 0.0
    %638 = vmatprep.subr.mxu0 0.0
    %639 = vmatpush1.msra.mxu0 0.0
    %640 = vmatprep.subr.mxu0 0.0
    %641 = vmatpush1.msra.mxu0 0.0
    %642 = vmatprep.subr.mxu0 0.0
    %643 = vmatpush1.msra.mxu0 0.0
    %644 = vmatprep.mubr.f32.mxu0 0.0
    %645 = vmatmul.mubr.f32.gmra.mrb[0].mxu0 %v557
    %v646 = vpop.f32.mrb[0].mxu0
    %v647 = vadd.f32 0.0, %v646
    %v648 = vpop.f32.mrb[0].mxu0
    %649 = vmatprep.mubr.f32.mxu0 0.0
    %650 = vmatmul.mubr.f32.gmra.mrb[0].mxu0 %v560
    %v651 = vpop.f32.mrb[0].mxu0
    %v652 = vadd.f32 0.0, %v651
    %v653 = vpop.f32.mrb[0].mxu0
    %654 = vmatprep.mubr.f32.mxu0 0.0
    %655 = vmatmul.mubr.f32.gmra.mrb[0].mxu0 %v563
    %v656 = vpop.f32.mrb[0].mxu0
    %v657 = vadd.f32 0.0, %v656
    %v658 = vpop.f32.mrb[0].mxu0
    %659 = vmatprep.mubr.f32.mxu0 0.0
    %660 = vmatmul.mubr.f32.gmra.mrb[0].mxu0 %v566
    %v661 = vpop.f32.mrb[0].mxu0
    %v662 = vadd.f32 0.0, %v661
    %v663 = vpop.f32.mrb[0].mxu0
    %664 = vmatprep.mubr.f32.mxu0 0.0
    %665 = vmatmul.mubr.f32.gmra.mrb[0].mxu0 %v569
    %v666 = vpop.f32.mrb[0].mxu0
    %v667 = vadd.f32 0.0, %v666
    %v668 = vpop.f32.mrb[0].mxu0
    %669 = vmatprep.mubr.f32.mxu0 0.0
    %670 = vmatmul.mubr.f32.gmra.mrb[0].mxu0 %v572
    %v671 = vpop.f32.mrb[0].mxu0
    %v672 = vadd.f32 0.0, %v671
    %v673 = vpop.f32.mrb[0].mxu0
    %674 = vmatprep.mubr.f32.mxu0 0.0
    %675 = vmatmul.mubr.f32.gmra.mrb[0].mxu0 %v575
    %v676 = vpop.f32.mrb[0].mxu0
    %v677 = vadd.f32 0.0, %v676
    %v678 = vpop.f32.mrb[0].mxu0
    %679 = vmatprep.mubr.f32.mxu0 0.0
    %680 = vmatmul.mubr.f32.gmra.mrb[0].mxu0 %v578
    %v681 = vpop.f32.mrb[0].mxu0
    %v682 = vadd.f32 0.0, %v681
    %v683 = vpop.f32.mrb[0].mxu0
    %684 = vdwg.mxu0
    %v686 = vsel %vm168, %v72, 0
    %v689 = vsel %vm168, %v73, 0
    %v692 = vsel %vm168, %v74, 0
    %v695 = vsel %vm168, %v75, 0
    %v698 = vsel %vm168, %v76, 0
    %v701 = vsel %vm168, %v77, 0
    %v704 = vsel %vm168, %v78, 0
    %v707 = vsel %vm168, %v79, 0
    %709 = vmatprep.subr.mxu0 0.0
    %710 = vmatpush1.msra.mxu0 %v136
    %711 = vmatprep.subr.mxu0 0.0
    %712 = vmatpush1.msra.mxu0 %v137
    %713 = vmatprep.subr.mxu0 0.0
    %714 = vmatpush1.msra.mxu0 %v138
    %715 = vmatprep.subr.mxu0 0.0
    %716 = vmatpush1.msra.mxu0 %v139
    %717 = vmatprep.subr.mxu0 0.0
    %718 = vmatpush1.msra.mxu0 %v140
    %719 = vmatprep.subr.mxu0 0.0
    %720 = vmatpush1.msra.mxu0 %v141
    %721 = vmatprep.subr.mxu0 0.0
    %722 = vmatpush1.msra.mxu0 %v142
    %723 = vmatprep.subr.mxu0 0.0
    %724 = vmatpush1.msra.mxu0 %v143
    %725 = vmatprep.subr.mxu0 0.0
    %726 = vmatpush1.msra.mxu0 0.0
    %727 = vmatprep.subr.mxu0 0.0
    %728 = vmatpush1.msra.mxu0 0.0
    %729 = vmatprep.subr.mxu0 0.0
    %730 = vmatpush1.msra.mxu0 0.0
    %731 = vmatprep.subr.mxu0 0.0
    %732 = vmatpush1.msra.mxu0 0.0
    %733 = vmatprep.subr.mxu0 0.0
    %734 = vmatpush1.msra.mxu0 0.0
    %735 = vmatprep.subr.mxu0 0.0
    %736 = vmatpush1.msra.mxu0 0.0
    %737 = vmatprep.subr.mxu0 0.0
    %738 = vmatpush1.msra.mxu0 0.0
    %739 = vmatprep.subr.mxu0 0.0
    %740 = vmatpush1.msra.mxu0 0.0
    %741 = vmatprep.subr.mxu0 0.0
    %742 = vmatpush1.msra.mxu0 0.0
    %743 = vmatprep.subr.mxu0 0.0
    %744 = vmatpush1.msra.mxu0 0.0
    %745 = vmatprep.subr.mxu0 0.0
    %746 = vmatpush1.msra.mxu0 0.0
    %747 = vmatprep.subr.mxu0 0.0
    %748 = vmatpush1.msra.mxu0 0.0
    %749 = vmatprep.subr.mxu0 0.0
    %750 = vmatpush1.msra.mxu0 0.0
    %751 = vmatprep.subr.mxu0 0.0
    %752 = vmatpush1.msra.mxu0 0.0
    %753 = vmatprep.subr.mxu0 0.0
    %754 = vmatpush1.msra.mxu0 0.0
    %755 = vmatprep.subr.mxu0 0.0
    %756 = vmatpush1.msra.mxu0 0.0
    %757 = vmatprep.subr.mxu0 0.0
    %758 = vmatpush1.msra.mxu0 0.0
    %759 = vmatprep.subr.mxu0 0.0
    %760 = vmatpush1.msra.mxu0 0.0
    %761 = vmatprep.subr.mxu0 0.0
    %762 = vmatpush1.msra.mxu0 0.0
    %763 = vmatprep.subr.mxu0 0.0
    %764 = vmatpush1.msra.mxu0 0.0
    %765 = vmatprep.subr.mxu0 0.0
    %766 = vmatpush1.msra.mxu0 0.0
    %767 = vmatprep.subr.mxu0 0.0
    %768 = vmatpush1.msra.mxu0 0.0
    %769 = vmatprep.subr.mxu0 0.0
    %770 = vmatpush1.msra.mxu0 0.0
    %771 = vmatprep.subr.mxu0 0.0
    %772 = vmatpush1.msra.mxu0 0.0
    %773 = vmatprep.mubr.f32.mxu0 0.0
    %774 = vmatmul.mubr.f32.gmra.mrb[0].mxu0 %v686
    %v775 = vpop.f32.mrb[0].mxu0
    %v776 = vadd.f32 0.0, %v775
    %v777 = vpop.f32.mrb[0].mxu0
    %778 = vmatprep.mubr.f32.mxu0 0.0
    %779 = vmatmul.mubr.f32.gmra.mrb[0].mxu0 %v689
    %v780 = vpop.f32.mrb[0].mxu0
    %v781 = vadd.f32 0.0, %v780
    %v782 = vpop.f32.mrb[0].mxu0
    %783 = vmatprep.mubr.f32.mxu0 0.0
    %784 = vmatmul.mubr.f32.gmra.mrb[0].mxu0 %v692
    %v785 = vpop.f32.mrb[0].mxu0
    %v786 = vadd.f32 0.0, %v785
    %v787 = vpop.f32.mrb[0].mxu0
    %788 = vmatprep.mubr.f32.mxu0 0.0
    %789 = vmatmul.mubr.f32.gmra.mrb[0].mxu0 %v695
    %v790 = vpop.f32.mrb[0].mxu0
    %v791 = vadd.f32 0.0, %v790
    %v792 = vpop.f32.mrb[0].mxu0
    %793 = vmatprep.mubr.f32.mxu0 0.0
    %794 = vmatmul.mubr.f32.gmra.mrb[0].mxu0 %v698
    %v795 = vpop.f32.mrb[0].mxu0
    %v796 = vadd.f32 0.0, %v795
    %v797 = vpop.f32.mrb[0].mxu0
    %798 = vmatprep.mubr.f32.mxu0 0.0
    %799 = vmatmul.mubr.f32.gmra.mrb[0].mxu0 %v701
    %v800 = vpop.f32.mrb[0].mxu0
    %v801 = vadd.f32 0.0, %v800
    %v802 = vpop.f32.mrb[0].mxu0
    %803 = vmatprep.mubr.f32.mxu0 0.0
    %804 = vmatmul.mubr.f32.gmra.mrb[0].mxu0 %v704
    %v805 = vpop.f32.mrb[0].mxu0
    %v806 = vadd.f32 0.0, %v805
    %v807 = vpop.f32.mrb[0].mxu0
    %808 = vmatprep.mubr.f32.mxu0 0.0
    %809 = vmatmul.mubr.f32.gmra.mrb[0].mxu0 %v707
    %v810 = vpop.f32.mrb[0].mxu0
    %v811 = vadd.f32 0.0, %v810
    %v812 = vpop.f32.mrb[0].mxu0
    %813 = vdwg.mxu0
    %v815 = vsel %vm168, %v80, 0
    %v818 = vsel %vm168, %v81, 0
    %v821 = vsel %vm168, %v82, 0
    %v824 = vsel %vm168, %v83, 0
    %v827 = vsel %vm168, %v84, 0
    %v830 = vsel %vm168, %v85, 0
    %v833 = vsel %vm168, %v86, 0
    %v836 = vsel %vm168, %v87, 0
    %838 = vmatprep.subr.mxu0 0.0
    %839 = vmatpush1.msra.mxu0 %v144
    %840 = vmatprep.subr.mxu0 0.0
    %841 = vmatpush1.msra.mxu0 %v145
    %842 = vmatprep.subr.mxu0 0.0
    %843 = vmatpush1.msra.mxu0 %v146
    %844 = vmatprep.subr.mxu0 0.0
    %845 = vmatpush1.msra.mxu0 %v147
    %846 = vmatprep.subr.mxu0 0.0
    %847 = vmatpush1.msra.mxu0 %v148
    %848 = vmatprep.subr.mxu0 0.0
    %849 = vmatpush1.msra.mxu0 %v149
    %850 = vmatprep.subr.mxu0 0.0
    %851 = vmatpush1.msra.mxu0 %v150
    %852 = vmatprep.subr.mxu0 0.0
    %853 = vmatpush1.msra.mxu0 %v151
    %854 = vmatprep.subr.mxu0 0.0
    %855 = vmatpush1.msra.mxu0 0.0
    %856 = vmatprep.subr.mxu0 0.0
    %857 = vmatpush1.msra.mxu0 0.0
    %858 = vmatprep.subr.mxu0 0.0
    %859 = vmatpush1.msra.mxu0 0.0
    %860 = vmatprep.subr.mxu0 0.0
    %861 = vmatpush1.msra.mxu0 0.0
    %862 = vmatprep.subr.mxu0 0.0
    %863 = vmatpush1.msra.mxu0 0.0
    %864 = vmatprep.subr.mxu0 0.0
    %865 = vmatpush1.msra.mxu0 0.0
    %866 = vmatprep.subr.mxu0 0.0
    %867 = vmatpush1.msra.mxu0 0.0
    %868 = vmatprep.subr.mxu0 0.0
    %869 = vmatpush1.msra.mxu0 0.0
    %870 = vmatprep.subr.mxu0 0.0
    %871 = vmatpush1.msra.mxu0 0.0
    %872 = vmatprep.subr.mxu0 0.0
    %873 = vmatpush1.msra.mxu0 0.0
    %874 = vmatprep.subr.mxu0 0.0
    %875 = vmatpush1.msra.mxu0 0.0
    %876 = vmatprep.subr.mxu0 0.0
    %877 = vmatpush1.msra.mxu0 0.0
    %878 = vmatprep.subr.mxu0 0.0
    %879 = vmatpush1.msra.mxu0 0.0
    %880 = vmatprep.subr.mxu0 0.0
    %881 = vmatpush1.msra.mxu0 0.0
    %882 = vmatprep.subr.mxu0 0.0
    %883 = vmatpush1.msra.mxu0 0.0
    %884 = vmatprep.subr.mxu0 0.0
    %885 = vmatpush1.msra.mxu0 0.0
    %886 = vmatprep.subr.mxu0 0.0
    %887 = vmatpush1.msra.mxu0 0.0
    %888 = vmatprep.subr.mxu0 0.0
    %889 = vmatpush1.msra.mxu0 0.0
    %890 = vmatprep.subr.mxu0 0.0
    %891 = vmatpush1.msra.mxu0 0.0
    %892 = vmatprep.subr.mxu0 0.0
    %893 = vmatpush1.msra.mxu0 0.0
    %894 = vmatprep.subr.mxu0 0.0
    %895 = vmatpush1.msra.mxu0 0.0
    %896 = vmatprep.subr.mxu0 0.0
    %897 = vmatpush1.msra.mxu0 0.0
    %898 = vmatprep.subr.mxu0 0.0
    %899 = vmatpush1.msra.mxu0 0.0
    %900 = vmatprep.subr.mxu0 0.0
    %901 = vmatpush1.msra.mxu0 0.0
    %902 = vmatprep.mubr.f32.mxu0 0.0
    %903 = vmatmul.mubr.f32.gmra.mrb[0].mxu0 %v815
    %v904 = vpop.f32.mrb[0].mxu0
    %v905 = vadd.f32 0.0, %v904
    %v906 = vpop.f32.mrb[0].mxu0
    %907 = vmatprep.mubr.f32.mxu0 0.0
    %908 = vmatmul.mubr.f32.gmra.mrb[0].mxu0 %v818
    %v909 = vpop.f32.mrb[0].mxu0
    %v910 = vadd.f32 0.0, %v909
    %v911 = vpop.f32.mrb[0].mxu0
    %912 = vmatprep.mubr.f32.mxu0 0.0
    %913 = vmatmul.mubr.f32.gmra.mrb[0].mxu0 %v821
    %v914 = vpop.f32.mrb[0].mxu0
    %v915 = vadd.f32 0.0, %v914
    %v916 = vpop.f32.mrb[0].mxu0
    %917 = vmatprep.mubr.f32.mxu0 0.0
    %918 = vmatmul.mubr.f32.gmra.mrb[0].mxu0 %v824
    %v919 = vpop.f32.mrb[0].mxu0
    %v920 = vadd.f32 0.0, %v919
    %v921 = vpop.f32.mrb[0].mxu0
    %922 = vmatprep.mubr.f32.mxu0 0.0
    %923 = vmatmul.mubr.f32.gmra.mrb[0].mxu0 %v827
    %v924 = vpop.f32.mrb[0].mxu0
    %v925 = vadd.f32 0.0, %v924
    %v926 = vpop.f32.mrb[0].mxu0
    %927 = vmatprep.mubr.f32.mxu0 0.0
    %928 = vmatmul.mubr.f32.gmra.mrb[0].mxu0 %v830
    %v929 = vpop.f32.mrb[0].mxu0
    %v930 = vadd.f32 0.0, %v929
    %v931 = vpop.f32.mrb[0].mxu0
    %932 = vmatprep.mubr.f32.mxu0 0.0
    %933 = vmatmul.mubr.f32.gmra.mrb[0].mxu0 %v833
    %v934 = vpop.f32.mrb[0].mxu0
    %v935 = vadd.f32 0.0, %v934
    %v936 = vpop.f32.mrb[0].mxu0
    %937 = vmatprep.mubr.f32.mxu0 0.0
    %938 = vmatmul.mubr.f32.gmra.mrb[0].mxu0 %v836
    %v939 = vpop.f32.mrb[0].mxu0
    %v940 = vadd.f32 0.0, %v939
    %v941 = vpop.f32.mrb[0].mxu0
    %942 = vdwg.mxu0
    %v944 = vsel %vm168, %v88, 0
    %v947 = vsel %vm168, %v89, 0
    %v950 = vsel %vm168, %v90, 0
    %v953 = vsel %vm168, %v91, 0
    %v956 = vsel %vm168, %v92, 0
    %v959 = vsel %vm168, %v93, 0
    %v962 = vsel %vm168, %v94, 0
    %v965 = vsel %vm168, %v95, 0
    %967 = vmatprep.subr.mxu0 0.0
    %968 = vmatpush1.msra.mxu0 %v152
    %969 = vmatprep.subr.mxu0 0.0
    %970 = vmatpush1.msra.mxu0 %v153
    %971 = vmatprep.subr.mxu0 0.0
    %972 = vmatpush1.msra.mxu0 %v154
    %973 = vmatprep.subr.mxu0 0.0
    %974 = vmatpush1.msra.mxu0 %v155
    %975 = vmatprep.subr.mxu0 0.0
    %976 = vmatpush1.msra.mxu0 %v156
    %977 = vmatprep.subr.mxu0 0.0
    %978 = vmatpush1.msra.mxu0 %v157
    %979 = vmatprep.subr.mxu0 0.0
    %980 = vmatpush1.msra.mxu0 %v158
    %981 = vmatprep.subr.mxu0 0.0
    %982 = vmatpush1.msra.mxu0 %v159
    %983 = vmatprep.subr.mxu0 0.0
    %984 = vmatpush1.msra.mxu0 0.0
    %985 = vmatprep.subr.mxu0 0.0
    %986 = vmatpush1.msra.mxu0 0.0
    %987 = vmatprep.subr.mxu0 0.0
    %988 = vmatpush1.msra.mxu0 0.0
    %989 = vmatprep.subr.mxu0 0.0
    %990 = vmatpush1.msra.mxu0 0.0
    %991 = vmatprep.subr.mxu0 0.0
    %992 = vmatpush1.msra.mxu0 0.0
    %993 = vmatprep.subr.mxu0 0.0
    %994 = vmatpush1.msra.mxu0 0.0
    %995 = vmatprep.subr.mxu0 0.0
    %996 = vmatpush1.msra.mxu0 0.0
    %997 = vmatprep.subr.mxu0 0.0
    %998 = vmatpush1.msra.mxu0 0.0
    %999 = vmatprep.subr.mxu0 0.0
    %1000 = vmatpush1.msra.mxu0 0.0
    %1001 = vmatprep.subr.mxu0 0.0
    %1002 = vmatpush1.msra.mxu0 0.0
    %1003 = vmatprep.subr.mxu0 0.0
    %1004 = vmatpush1.msra.mxu0 0.0
    %1005 = vmatprep.subr.mxu0 0.0
    %1006 = vmatpush1.msra.mxu0 0.0
    %1007 = vmatprep.subr.mxu0 0.0
    %1008 = vmatpush1.msra.mxu0 0.0
    %1009 = vmatprep.subr.mxu0 0.0
    %1010 = vmatpush1.msra.mxu0 0.0
    %1011 = vmatprep.subr.mxu0 0.0
    %1012 = vmatpush1.msra.mxu0 0.0
    %1013 = vmatprep.subr.mxu0 0.0
    %1014 = vmatpush1.msra.mxu0 0.0
    %1015 = vmatprep.subr.mxu0 0.0
    %1016 = vmatpush1.msra.mxu0 0.0
    %1017 = vmatprep.subr.mxu0 0.0
    %1018 = vmatpush1.msra.mxu0 0.0
    %1019 = vmatprep.subr.mxu0 0.0
    %1020 = vmatpush1.msra.mxu0 0.0
    %1021 = vmatprep.subr.mxu0 0.0
    %1022 = vmatpush1.msra.mxu0 0.0
    %1023 = vmatprep.subr.mxu0 0.0
    %1024 = vmatpush1.msra.mxu0 0.0
    %1025 = vmatprep.subr.mxu0 0.0
    %1026 = vmatpush1.msra.mxu0 0.0
    %1027 = vmatprep.subr.mxu0 0.0
    %1028 = vmatpush1.msra.mxu0 0.0
    %1029 = vmatprep.subr.mxu0 0.0
    %1030 = vmatpush1.msra.mxu0 0.0
    %1031 = vmatprep.mubr.f32.mxu0 0.0
    %1032 = vmatmul.mubr.f32.gmra.mrb[0].mxu0 %v944
    %v1033 = vpop.f32.mrb[0].mxu0
    %v1034 = vadd.f32 0.0, %v1033
    %v1035 = vpop.f32.mrb[0].mxu0
    %1036 = vmatprep.mubr.f32.mxu0 0.0
    %1037 = vmatmul.mubr.f32.gmra.mrb[0].mxu0 %v947
    %v1038 = vpop.f32.mrb[0].mxu0
    %v1039 = vadd.f32 0.0, %v1038
    %v1040 = vpop.f32.mrb[0].mxu0
    %1041 = vmatprep.mubr.f32.mxu0 0.0
    %1042 = vmatmul.mubr.f32.gmra.mrb[0].mxu0 %v950
    %v1043 = vpop.f32.mrb[0].mxu0
    %v1044 = vadd.f32 0.0, %v1043
    %v1045 = vpop.f32.mrb[0].mxu0
    %1046 = vmatprep.mubr.f32.mxu0 0.0
    %1047 = vmatmul.mubr.f32.gmra.mrb[0].mxu0 %v953
    %v1048 = vpop.f32.mrb[0].mxu0
    %v1049 = vadd.f32 0.0, %v1048
    %v1050 = vpop.f32.mrb[0].mxu0
    %1051 = vmatprep.mubr.f32.mxu0 0.0
    %1052 = vmatmul.mubr.f32.gmra.mrb[0].mxu0 %v956
    %v1053 = vpop.f32.mrb[0].mxu0
    %v1054 = vadd.f32 0.0, %v1053
    %v1055 = vpop.f32.mrb[0].mxu0
    %1056 = vmatprep.mubr.f32.mxu0 0.0
    %1057 = vmatmul.mubr.f32.gmra.mrb[0].mxu0 %v959
    %v1058 = vpop.f32.mrb[0].mxu0
    %v1059 = vadd.f32 0.0, %v1058
    %v1060 = vpop.f32.mrb[0].mxu0
    %1061 = vmatprep.mubr.f32.mxu0 0.0
    %1062 = vmatmul.mubr.f32.gmra.mrb[0].mxu0 %v962
    %v1063 = vpop.f32.mrb[0].mxu0
    %v1064 = vadd.f32 0.0, %v1063
    %v1065 = vpop.f32.mrb[0].mxu0
    %1066 = vmatprep.mubr.f32.mxu0 0.0
    %1067 = vmatmul.mubr.f32.gmra.mrb[0].mxu0 %v965
    %v1068 = vpop.f32.mrb[0].mxu0
    %v1069 = vadd.f32 0.0, %v1068
    %v1070 = vpop.f32.mrb[0].mxu0
    %1071 = vdwg.mxu0
    %v1073 = vsel %vm168, %v96, 0
    %v1076 = vsel %vm168, %v97, 0
    %v1079 = vsel %vm168, %v98, 0
    %v1082 = vsel %vm168, %v99, 0
    %v1085 = vsel %vm168, %v100, 0
    %v1088 = vsel %vm168, %v101, 0
    %v1091 = vsel %vm168, %v102, 0
    %v1094 = vsel %vm168, %v103, 0
    %1096 = vmatprep.subr.mxu0 0.0
    %1097 = vmatpush1.msra.mxu0 %v160
    %1098 = vmatprep.subr.mxu0 0.0
    %1099 = vmatpush1.msra.mxu0 %v161
    %1100 = vmatprep.subr.mxu0 0.0
    %1101 = vmatpush1.msra.mxu0 %v162
    %1102 = vmatprep.subr.mxu0 0.0
    %1103 = vmatpush1.msra.mxu0 %v163
    %1104 = vmatprep.subr.mxu0 0.0
    %1105 = vmatpush1.msra.mxu0 %v164
    %1106 = vmatprep.subr.mxu0 0.0
    %1107 = vmatpush1.msra.mxu0 %v165
    %1108 = vmatprep.subr.mxu0 0.0
    %1109 = vmatpush1.msra.mxu0 %v166
    %1110 = vmatprep.subr.mxu0 0.0
    %1111 = vmatpush1.msra.mxu0 %v167
    %1112 = vmatprep.subr.mxu0 0.0
    %1113 = vmatpush1.msra.mxu0 0.0
    %1114 = vmatprep.subr.mxu0 0.0
    %1115 = vmatpush1.msra.mxu0 0.0
    %1116 = vmatprep.subr.mxu0 0.0
    %1117 = vmatpush1.msra.mxu0 0.0
    %1118 = vmatprep.subr.mxu0 0.0
    %1119 = vmatpush1.msra.mxu0 0.0
    %1120 = vmatprep.subr.mxu0 0.0
    %1121 = vmatpush1.msra.mxu0 0.0
    %1122 = vmatprep.subr.mxu0 0.0
    %1123 = vmatpush1.msra.mxu0 0.0
    %1124 = vmatprep.subr.mxu0 0.0
    %1125 = vmatpush1.msra.mxu0 0.0
    %1126 = vmatprep.subr.mxu0 0.0
    %1127 = vmatpush1.msra.mxu0 0.0
    %1128 = vmatprep.subr.mxu0 0.0
    %1129 = vmatpush1.msra.mxu0 0.0
    %1130 = vmatprep.subr.mxu0 0.0
    %1131 = vmatpush1.msra.mxu0 0.0
    %1132 = vmatprep.subr.mxu0 0.0
    %1133 = vmatpush1.msra.mxu0 0.0
    %1134 = vmatprep.subr.mxu0 0.0
    %1135 = vmatpush1.msra.mxu0 0.0
    %1136 = vmatprep.subr.mxu0 0.0
    %1137 = vmatpush1.msra.mxu0 0.0
    %1138 = vmatprep.subr.mxu0 0.0
    %1139 = vmatpush1.msra.mxu0 0.0
    %1140 = vmatprep.subr.mxu0 0.0
    %1141 = vmatpush1.msra.mxu0 0.0
    %1142 = vmatprep.subr.mxu0 0.0
    %1143 = vmatpush1.msra.mxu0 0.0
    %1144 = vmatprep.subr.mxu0 0.0
    %1145 = vmatpush1.msra.mxu0 0.0
    %1146 = vmatprep.subr.mxu0 0.0
    %1147 = vmatpush1.msra.mxu0 0.0
    %1148 = vmatprep.subr.mxu0 0.0
    %1149 = vmatpush1.msra.mxu0 0.0
    %1150 = vmatprep.subr.mxu0 0.0
    %1151 = vmatpush1.msra.mxu0 0.0
    %1152 = vmatprep.subr.mxu0 0.0
    %1153 = vmatpush1.msra.mxu0 0.0
    %1154 = vmatprep.subr.mxu0 0.0
    %1155 = vmatpush1.msra.mxu0 0.0
    %1156 = vmatprep.subr.mxu0 0.0
    %1157 = vmatpush1.msra.mxu0 0.0
    %1158 = vmatprep.subr.mxu0 0.0
    %1159 = vmatpush1.msra.mxu0 0.0
    %1160 = vmatprep.mubr.f32.mxu0 0.0
    %1161 = vmatmul.mubr.f32.gmra.mrb[0].mxu0 %v1073
    %v1162 = vpop.f32.mrb[0].mxu0
    %v1163 = vadd.f32 0.0, %v1162
    %v1164 = vpop.f32.mrb[0].mxu0
    %1165 = vmatprep.mubr.f32.mxu0 0.0
    %1166 = vmatmul.mubr.f32.gmra.mrb[0].mxu0 %v1076
    %v1167 = vpop.f32.mrb[0].mxu0
    %v1168 = vadd.f32 0.0, %v1167
    %v1169 = vpop.f32.mrb[0].mxu0
    %1170 = vmatprep.mubr.f32.mxu0 0.0
    %1171 = vmatmul.mubr.f32.gmra.mrb[0].mxu0 %v1079
    %v1172 = vpop.f32.mrb[0].mxu0
    %v1173 = vadd.f32 0.0, %v1172
    %v1174 = vpop.f32.mrb[0].mxu0
    %1175 = vmatprep.mubr.f32.mxu0 0.0
    %1176 = vmatmul.mubr.f32.gmra.mrb[0].mxu0 %v1082
    %v1177 = vpop.f32.mrb[0].mxu0
    %v1178 = vadd.f32 0.0, %v1177
    %v1179 = vpop.f32.mrb[0].mxu0
    %1180 = vmatprep.mubr.f32.mxu0 0.0
    %1181 = vmatmul.mubr.f32.gmra.mrb[0].mxu0 %v1085
    %v1182 = vpop.f32.mrb[0].mxu0
    %v1183 = vadd.f32 0.0, %v1182
    %v1184 = vpop.f32.mrb[0].mxu0
    %1185 = vmatprep.mubr.f32.mxu0 0.0
    %1186 = vmatmul.mubr.f32.gmra.mrb[0].mxu0 %v1088
    %v1187 = vpop.f32.mrb[0].mxu0
    %v1188 = vadd.f32 0.0, %v1187
    %v1189 = vpop.f32.mrb[0].mxu0
    %1190 = vmatprep.mubr.f32.mxu0 0.0
    %1191 = vmatmul.mubr.f32.gmra.mrb[0].mxu0 %v1091
    %v1192 = vpop.f32.mrb[0].mxu0
    %v1193 = vadd.f32 0.0, %v1192
    %v1194 = vpop.f32.mrb[0].mxu0
    %1195 = vmatprep.mubr.f32.mxu0 0.0
    %1196 = vmatmul.mubr.f32.gmra.mrb[0].mxu0 %v1094
    %v1197 = vpop.f32.mrb[0].mxu0
    %v1198 = vadd.f32 0.0, %v1197
    %v1199 = vpop.f32.mrb[0].mxu0
    %1200 = vdwg.mxu0
    %1201 = vst [vmem:[#allocation7] sm:$0xff] %v260
    %1202 = vst [vmem:[#allocation7 + $0x8] sm:$0xff] %v265
    %1203 = vst [vmem:[#allocation7 + $0x10] sm:$0xff] %v270
    %1204 = vst [vmem:[#allocation7 + $0x18] sm:$0xff] %v275
    %1205 = vst [vmem:[#allocation7 + $0x20] sm:$0xff] %v280
    %1206 = vst [vmem:[#allocation7 + $0x28] sm:$0xff] %v285
    %1207 = vst [vmem:[#allocation7 + $0x30] sm:$0xff] %v290
    %1208 = vst [vmem:[#allocation7 + $0x38] sm:$0xff] %v295
    %1209 = vst [vmem:[#allocation7 + $0x40] sm:$0xff] %v389
    %1210 = vst [vmem:[#allocation7 + $0x48] sm:$0xff] %v394
    %1211 = vst [vmem:[#allocation7 + $0x50] sm:$0xff] %v399
    %1212 = vst [vmem:[#allocation7 + $0x58] sm:$0xff] %v404
    %1213 = vst [vmem:[#allocation7 + $0x60] sm:$0xff] %v409
    %1214 = vst [vmem:[#allocation7 + $0x68] sm:$0xff] %v414
    %1215 = vst [vmem:[#allocation7 + $0x70] sm:$0xff] %v419
    %1216 = vst [vmem:[#allocation7 + $0x78] sm:$0xff] %v424
    %1217 = vst [vmem:[#allocation7 + $0x80] sm:$0xff] %v518
    %1218 = vst [vmem:[#allocation7 + $0x88] sm:$0xff] %v523
    %1219 = vst [vmem:[#allocation7 + $0x90] sm:$0xff] %v528
    %1220 = vst [vmem:[#allocation7 + $0x98] sm:$0xff] %v533
    %1221 = vst [vmem:[#allocation7 + $0xa0] sm:$0xff] %v538
    %1222 = vst [vmem:[#allocation7 + $0xa8] sm:$0xff] %v543
    %1223 = vst [vmem:[#allocation7 + $0xb0] sm:$0xff] %v548
    %1224 = vst [vmem:[#allocation7 + $0xb8] sm:$0xff] %v553
    %1225 = vst [vmem:[#allocation7 + $0xc0] sm:$0xff] %v647
    %1226 = vst [vmem:[#allocation7 + $0xc8] sm:$0xff] %v652
    %1227 = vst [vmem:[#allocation7 + $0xd0] sm:$0xff] %v657
    %1228 = vst [vmem:[#allocation7 + $0xd8] sm:$0xff] %v662
    %1229 = vst [vmem:[#allocation7 + $0xe0] sm:$0xff] %v667
    %1230 = vst [vmem:[#allocation7 + $0xe8] sm:$0xff] %v672
    %1231 = vst [vmem:[#allocation7 + $0xf0] sm:$0xff] %v677
    %1232 = vst [vmem:[#allocation7 + $0xf8] sm:$0xff] %v682
    %1233 = vst [vmem:[#allocation7 + $0x100] sm:$0xff] %v776
    %1234 = vst [vmem:[#allocation7 + $0x108] sm:$0xff] %v781
    %1235 = vst [vmem:[#allocation7 + $0x110] sm:$0xff] %v786
    %1236 = vst [vmem:[#allocation7 + $0x118] sm:$0xff] %v791
    %1237 = vst [vmem:[#allocation7 + $0x120] sm:$0xff] %v796
    %1238 = vst [vmem:[#allocation7 + $0x128] sm:$0xff] %v801
    %1239 = vst [vmem:[#allocation7 + $0x130] sm:$0xff] %v806
    %1240 = vst [vmem:[#allocation7 + $0x138] sm:$0xff] %v811
    %1241 = vst [vmem:[#allocation7 + $0x140] sm:$0xff] %v905
    %1242 = vst [vmem:[#allocation7 + $0x148] sm:$0xff] %v910
    %1243 = vst [vmem:[#allocation7 + $0x150] sm:$0xff] %v915
    %1244 = vst [vmem:[#allocation7 + $0x158] sm:$0xff] %v920
    %1245 = vst [vmem:[#allocation7 + $0x160] sm:$0xff] %v925
    %1246 = vst [vmem:[#allocation7 + $0x168] sm:$0xff] %v930
    %1247 = vst [vmem:[#allocation7 + $0x170] sm:$0xff] %v935
    %1248 = vst [vmem:[#allocation7 + $0x178] sm:$0xff] %v940
    %1249 = vst [vmem:[#allocation7 + $0x180] sm:$0xff] %v1034
    %1250 = vst [vmem:[#allocation7 + $0x188] sm:$0xff] %v1039
    %1251 = vst [vmem:[#allocation7 + $0x190] sm:$0xff] %v1044
    %1252 = vst [vmem:[#allocation7 + $0x198] sm:$0xff] %v1049
    %1253 = vst [vmem:[#allocation7 + $0x1a0] sm:$0xff] %v1054
    %1254 = vst [vmem:[#allocation7 + $0x1a8] sm:$0xff] %v1059
    %1255 = vst [vmem:[#allocation7 + $0x1b0] sm:$0xff] %v1064
    %1256 = vst [vmem:[#allocation7 + $0x1b8] sm:$0xff] %v1069
    %1257 = vst [vmem:[#allocation7 + $0x1c0] sm:$0xff] %v1163
    %1258 = vst [vmem:[#allocation7 + $0x1c8] sm:$0xff] %v1168
    %1259 = vst [vmem:[#allocation7 + $0x1d0] sm:$0xff] %v1173
    %1260 = vst [vmem:[#allocation7 + $0x1d8] sm:$0xff] %v1178
    %1261 = vst [vmem:[#allocation7 + $0x1e0] sm:$0xff] %v1183
    %1262 = vst [vmem:[#allocation7 + $0x1e8] sm:$0xff] %v1188
    %1263 = vst [vmem:[#allocation7 + $0x1f0] sm:$0xff] %v1193
    %1264 = vst [vmem:[#allocation7 + $0x1f8] sm:$0xff] %v1198
    // Predicated region
    $region18: #{tpu_custom_call.1} parent=1 // pred_check
      _
    $region19: #{tpu_custom_call.1} parent=1 // pred_check_branch
      %1266 = sbr.rel (0) target = $region21
    $region20: #{tpu_custom_call.1} parent=1 // pred_region
      %s1268 = ssub.s32 8192, 8192
      %1269 = vsyncadd [#allocation4], %s1268
      %s1270 = sshll.u32 [#allocation7], 4
      %s1271 = int_to_ptr.vmem [resolvable:$true] %s1270
      %1276 = dma.vmem_to_hbm [thread:$0]  %s1271, 8192, %s2, [#allocation4], 128, 128, 8
    $region21: #{tpu_custom_call.1} parent=1 // pred_fallthru
      _
    // Predicated region
    $region22: #{tpu_custom_call.1} parent=1 // pred_check
      _
    $region23: #{tpu_custom_call.1} parent=1 // pred_check_branch
      %1278 = sbr.rel (0) target = $region25
    $region24: #{tpu_custom_call.1} parent=1 // pred_region
      %1279 = dma.done [#allocation4], 8192
    $region25: #{tpu_custom_call.1} parent=1 // pred_fallthru
      _
    %1280 = vsyncpa [#allocation3], 1
    %1281 = vsyncpa [#allocation6], 1
    %1282 = vsyncpa [#allocation4], 1

</llo_original>
